<compile_context>
chip_gen: v7x
topology: tpu7x:2x2x1
jax: 0.10.0
libtpu: 0.0.40
codegen_flags: <defaults>
</compile_context>

<pallas_src>
import functools

import jax
import jax.numpy as jnp
from jax.experimental import pallas as pl
from jax.experimental.pallas import tpu as pltpu


def _cdiv(a, b):
    return -(-a // b)


@functools.lru_cache(maxsize=1)
def _vmem_budget():
    """(live-block budget, vmem_limit_bytes), sized per TPU generation."""
    cap = None
    try:
        if hasattr(pltpu, "get_tpu_info"):
            cap = getattr(pltpu.get_tpu_info(), "vmem_capacity_bytes", None)
    except Exception:
        cap = None
    if not cap:
        cap = 64 << 20  # conservative default: assume the smallest (v7x-class) VMEM
    if cap >= (96 << 20):            # v5e / v6e: 128 MiB physical VMEM
        return 80 << 20, 100 << 20
    return 24 << 20, 48 << 20        # v7x-class: 64 MiB physical VMEM


def _pick_row_tile(rows, row_bytes, const_bytes, budget_bytes, align,
                   max_rows=4096):
    """Rows per grid step: multiple of `align`, within the VMEM budget, capped
    at `max_rows`, then rebalanced so padding waste is minimal for the
    resulting number of grid steps."""
    rows_a = _cdiv(rows, align) * align
    budget = max(budget_bytes - const_bytes, align * row_bytes)
    cap = max(align, (budget // max(row_bytes, 1)) // align * align)
    tile = max(align, min(cap, max(align, (max_rows // align) * align), rows_a))
    steps = _cdiv(rows_a, tile)
    return _cdiv(_cdiv(rows_a, steps), align) * align


def _up_kernel(x1_ref, w_ref, b_ref, x2_ref, o_ref):
    # x1_ref : (tileR, Cin)      channels-last input pixels
    # w_ref  : (Cin, 4*Cout)     all 4 transposed-conv taps fused into lanes
    # b_ref  : (1, 4*Cout)       bias tiled per tap
    # x2_ref : (tileR, 4*Cout)   skip tensor, tap-major layout
    # o_ref  : (tileR, 4*Cout)   lane-dense output, unmasked full-width store
    y = jnp.dot(x1_ref[...], w_ref[...], preferred_element_type=jnp.float32)
    o_ref[...] = (x2_ref[...] + y + b_ref[...]).astype(o_ref.dtype)


@functools.partial(jax.jit, static_argnames=("use_bf16_matmul",))
def up_forward(x1, x2, weight, bias, use_bf16_matmul=False):
    """x1: (N, Cin, D, H1, W1), x2: (N, Cin//2, D, H2, W2),
    weight: (Cin, Cin//2, 1, 2, 2) [PyTorch ConvTranspose3d layout],
    bias: (Cin//2,). Returns x2 + pad(convtranspose(x1)) in NCDHW."""
    N, Cin, D, H1, W1 = x1.shape
    Cout = weight.shape[1]
    D2, H2, W2 = x2.shape[2], x2.shape[3], x2.shape[4]
    Hu, Wu = 2 * H1, 2 * W1

    # Faithful to the module: diffY/diffX come from dims 2/3 (D, H of NCDHW)
    # and F.pad applies them to the LAST two dims (H, W).
    diffY = D2 - D
    diffX = H2 - Hu
    ph0 = diffY // 2
    pw0 = diffX // 2
    # TODO(synk): negative diffs (F.pad cropping) are not supported; they never
    # yield an addable shape for this module anyway.
    assert diffY >= 0 and diffX >= 0, "negative pad (crop) not supported"
    assert (N, Cout, D, Hu + diffY, Wu + diffX) == tuple(x2.shape), (
        "x2 + pad(up(x1)) shapes are incompatible")

    FourCo = 4 * Cout
    R = N * D * H1 * W1

    # ---- layout glue (wrapper-side; input-fusion hints let XLA fold these
    # transposes into the pallas_call operands instead of extra HBM passes) ---
    # x1: NCDHW -> channels-last pixel rows (N*D*H1*W1, Cin)
    x1f = jnp.transpose(x1, (0, 2, 3, 4, 1)).reshape(R, Cin)
    # x2 region overlapped by the upsampled x1, rearranged tap-major
    # (n, d, h, w, kh, kw, co) so the kernel adds it with no in-kernel shuffle.
    x2i = x2[:, :, :, ph0:ph0 + Hu, pw0:pw0 + Wu]
    x2t = x2i.reshape(N, Cout, D, H1, 2, W1, 2)
    x2t = jnp.transpose(x2t, (0, 2, 3, 5, 4, 6, 1)).reshape(R, FourCo)
    # weight (Cin, Cout, 1, kh, kw) -> (Cin, (kh, kw, Cout)): 4 taps fused.
    wf = jnp.transpose(weight[:, :, 0], (0, 2, 3, 1)).reshape(Cin, FourCo)
    bf = jnp.tile(bias, 4).reshape(1, FourCo).astype(jnp.float32)

    if use_bf16_matmul:  # native MXU input dtype on v5e/v6e/v7x; f32 accum kept
        x1f = x1f.astype(jnp.bfloat16)
        wf = wf.astype(jnp.bfloat16)

    # ---- row tiling: generation-specific VMEM budget, flattened row axis ----
    align = 16 if (use_bf16_matmul or x1.dtype.itemsize < 4
                   or x2.dtype.itemsize < 4) else 8
    budget, vmem_limit = _vmem_budget()
    # Double-buffered per-row bytes of the streamed blocks (x1, x2, out).
    row_bytes = 2 * (x1f.dtype.itemsize * Cin
                     + x2t.dtype.itemsize * FourCo
                     + x2.dtype.itemsize * FourCo)
    # Resident (double-buffered) weight + bias bytes come out of the budget.
    const_bytes = 2 * (wf.dtype.itemsize * Cin * FourCo + 4 * FourCo)
    tile_rows = _pick_row_tile(R, row_bytes, const_bytes, budget, align)

    Rp = _cdiv(R, tile_rows) * tile_rows
    if Rp != R:  # pad a handful of rows instead of shrinking the tile
        x1f = jnp.pad(x1f, ((0, Rp - R), (0, 0)))
        x2t = jnp.pad(x2t, ((0, Rp - R), (0, 0)))

    flops = 2 * Rp * Cin * FourCo
    bytes_accessed = (x1f.size * x1f.dtype.itemsize
                      + wf.size * wf.dtype.itemsize
                      + bf.size * bf.dtype.itemsize
                      + x2t.size * x2t.dtype.itemsize
                      + Rp * FourCo * x2.dtype.itemsize)

    out_t = pl.pallas_call(
        _up_kernel,
        out_shape=jax.ShapeDtypeStruct((Rp, FourCo), x2.dtype),
        grid=(Rp // tile_rows,),
        in_specs=[
            pl.BlockSpec((tile_rows, Cin), lambda r: (r, 0)),
            pl.BlockSpec((Cin, FourCo), lambda r: (0, 0)),
            pl.BlockSpec((1, FourCo), lambda r: (0, 0)),
            pl.BlockSpec((tile_rows, FourCo), lambda r: (r, 0)),
        ],
        out_specs=pl.BlockSpec((tile_rows, FourCo), lambda r: (r, 0)),
        compiler_params=pltpu.CompilerParams(
            dimension_semantics=("parallel",),
            vmem_limit_bytes=vmem_limit,
            allow_input_fusion=[True, False, False, True]),
        cost_estimate=pl.CostEstimate(
            flops=flops, transcendentals=0, bytes_accessed=bytes_accessed),
    )(x1f, wf, bf, x2t)

    # ---- layout glue back: tap-major -> NCDHW, place into x2 ---------------
    y = out_t[:R].reshape(N, D, H1, W1, 2, 2, Cout)
    y = jnp.transpose(y, (0, 6, 1, 2, 4, 3, 5)).reshape(N, Cout, D, Hu, Wu)
    if diffY == 0 and diffX == 0:
        return y
    return x2.at[:, :, :, ph0:ph0 + Hu, pw0:pw0 + Wu].set(y)


def _reference_up(x1, x2, weight, bias):
    """Pure-JAX reference of the PyTorch forward (for correctness checks)."""
    N, Cin, D, H1, W1 = x1.shape
    Cout = weight.shape[1]
    y = jnp.einsum('ncdhw,coij->nodhiwj', x1, weight[:, :, 0],
                   precision=jax.lax.Precision.HIGHEST)
    y = y.reshape(N, Cout, D, 2 * H1, 2 * W1) + bias[None, :, None, None, None]
    D2, H2 = x2.shape[2], x2.shape[3]
    diffY = D2 - D            # dims 2/3, exactly as the PyTorch module does
    diffX = H2 - 2 * H1
    y = jnp.pad(y, ((0, 0), (0, 0), (0, 0),
                    (diffY // 2, diffY - diffY // 2),
                    (diffX // 2, diffX - diffX // 2)))
    return x2 + y


if __name__ == "__main__":
    key = jax.random.PRNGKey(0)

    def run_case(in_ch, N, D, H1, W1):
        Cout = in_ch // 2
        k1, k2, k3, k4 = jax.random.split(
            jax.random.fold_in(key, in_ch * 1000 + H1), 4)
        x1 = jax.random.normal(k1, (N, in_ch, D, H1, W1), jnp.float32)
        x2 = jax.random.normal(k2, (N, Cout, D, 2 * H1, 2 * W1), jnp.float32)
        w = 0.1 * jax.random.normal(k3, (in_ch, Cout, 1, 2, 2), jnp.float32)
        b = 0.1 * jax.random.normal(k4, (Cout,), jnp.float32)

        out = jax.block_until_ready(up_forward(x1, x2, w, b))
        ref = jax.block_until_ready(_reference_up(x1, x2, w, b))
        assert out.shape == ref.shape, (out.shape, ref.shape)
        assert jnp.allclose(out, ref, rtol=1e-4, atol=1e-4), (
            float(jnp.max(jnp.abs(out - ref))))

    # lane-dense case: 4*Cout = 128 lanes on the output minor axis
    run_case(in_ch=64, N=2, D=3, H1=8, W1=8)
    # small / odd sizes: 60 rows padded to the tile -> exercises the pad path
    run_case(in_ch=8, N=1, D=2, H1=5, W1=6)
    # larger spatial map: 4608 rows > 4096 cap -> multi-step grid, rebalanced tile
    run_case(in_ch=16, N=1, D=1, H1=64, W1=72)

    print("KERNEL_OK")
</pallas_src>

<mosaic_0001>
module attributes {stable_mosaic.version = 11 : i64} {
  func.func @_up_kernel(%arg0: i32, %arg1: memref<384x64xf32, #tpu.memory_space<vmem>>, %arg2: memref<64x128xf32, #tpu.memory_space<vmem>>, %arg3: memref<1x128xf32, #tpu.memory_space<vmem>>, %arg4: memref<384x128xf32, #tpu.memory_space<vmem>>, %arg5: memref<384x128xf32, #tpu.memory_space<vmem>>) attributes {dimension_semantics = [#tpu.dimension_semantics<parallel>], iteration_bounds = array<i64: 1>, scalar_prefetch = 0 : i64, scratch_operands = 0 : i64, tpu.core_type = #tpu.core_type<tc>, window_params = [{transform_indices = @transform_0, window_bounds = array<i64: 384, 64>}, {pipeline_mode = #tpu.pipeline_mode<synchronous>, transform_indices = @transform_1, window_bounds = array<i64: 64, 128>}, {pipeline_mode = #tpu.pipeline_mode<synchronous>, transform_indices = @transform_2, window_bounds = array<i64: 1, 128>}, {transform_indices = @transform_3, window_bounds = array<i64: 384, 128>}, {transform_indices = @transform_4, window_bounds = array<i64: 384, 128>}]} {
    %c0 = arith.constant 0 : index
    %c0_0 = arith.constant 0 : index
    %0 = vector.load %arg1[%c0, %c0_0] : memref<384x64xf32, #tpu.memory_space<vmem>>, vector<384x64xf32>
    %c0_1 = arith.constant 0 : index
    %c0_2 = arith.constant 0 : index
    %1 = vector.load %arg2[%c0_1, %c0_2] : memref<64x128xf32, #tpu.memory_space<vmem>>, vector<64x128xf32>
    %cst = arith.constant dense<0.000000e+00> : vector<384x128xf32>
    %2 = tpu.matmul %0, %1, %cst {dimension_numbers = #tpu.dot_dimension_numbers<[1], [0], [0], [1], [0, 0, 1, 1], [], []>} : vector<384x64xf32>, vector<64x128xf32>, vector<384x128xf32> -> vector<384x128xf32>
    %c0_3 = arith.constant 0 : index
    %c0_4 = arith.constant 0 : index
    %3 = vector.load %arg4[%c0_3, %c0_4] : memref<384x128xf32, #tpu.memory_space<vmem>>, vector<384x128xf32>
    %4 = arith.addf %3, %2 : vector<384x128xf32>
    %c0_5 = arith.constant 0 : index
    %c0_6 = arith.constant 0 : index
    %5 = vector.load %arg3[%c0_5, %c0_6] : memref<1x128xf32, #tpu.memory_space<vmem>>, vector<1x128xf32>
    %6 = vector.broadcast %5 : vector<1x128xf32> to vector<384x128xf32>
    %7 = arith.addf %4, %6 : vector<384x128xf32>
    %c0_7 = arith.constant 0 : index
    %c0_8 = arith.constant 0 : index
    %8 = vector.load %arg5[%c0_7, %c0_8] : memref<384x128xf32, #tpu.memory_space<vmem>>, vector<384x128xf32>
    tpu.vector_store %arg5[%c0_7, %c0_8], %7 {strides = array<i32>} : memref<384x128xf32, #tpu.memory_space<vmem>>, vector<384x128xf32>,
    return
  }
  func.func @transform_0(%arg0: i32) -> (i32, i32) {
    %c0_i32 = arith.constant 0 : i32
    %c0_i32_0 = arith.constant 0 : i32
    return %arg0, %c0_i32 : i32, i32
  }
  func.func @transform_1(%arg0: i32) -> (i32, i32) {
    %c0_i32 = arith.constant 0 : i32
    %c0_i32_0 = arith.constant 0 : i32
    %c0_i32_1 = arith.constant 0 : i32
    return %c0_i32, %c0_i32_0 : i32, i32
  }
  func.func @transform_2(%arg0: i32) -> (i32, i32) {
    %c0_i32 = arith.constant 0 : i32
    %c0_i32_0 = arith.constant 0 : i32
    %c0_i32_1 = arith.constant 0 : i32
    return %c0_i32, %c0_i32_0 : i32, i32
  }
  func.func @transform_3(%arg0: i32) -> (i32, i32) {
    %c0_i32 = arith.constant 0 : i32
    %c0_i32_0 = arith.constant 0 : i32
    return %arg0, %c0_i32 : i32, i32
  }
  func.func @transform_4(%arg0: i32) -> (i32, i32) {
    %c0_i32 = arith.constant 0 : i32
    %c0_i32_0 = arith.constant 0 : i32
    return %arg0, %c0_i32 : i32, i32
  }
}

</mosaic_0001>

<llo_original>
// kernel: tile.8
$region0: #{tile.8}
  #allocation0 [shape = 's32[1]{0}', space=sflag, size = 0x4, scoped, tag = 'scoped memory for tile.8']
  %s0 = inlined_call_operand.vmem [shape: f32[32], index: 0, kind: input, shape index: {}]
  %s1 = inlined_call_operand.vmem [shape: f32[4,32], index: 1, kind: output, shape index: {}]
  // Predicated region
  $region2: #{tile.8} parent=0 // pred_check
    _
  $region3: #{tile.8} parent=0 // pred_check_branch
    %3 = sbr.rel (0) target = $region5
  $region4: #{tile.8} parent=0 // pred_region
    _
  $region5: #{tile.8} parent=0 // pred_fallthru
    _
  %v4 = vld [vmem:[%s0] ss:$0 sm:$0xff]
  %5 = vst [vmem:[%s1] sm:$0xf] %v4

// kernel: tile.9
$region0: #{tile.9}
  %s0 = inlined_call_operand.vmem [shape: f32[4,32], index: 0, kind: input, shape index: {}]
  %s1 = inlined_call_operand.vmem [shape: f32[1,128], index: 1, kind: output, shape index: {}]
  $region1: #{tile.9} parent=0
    #allocation0 [shape = 'u8[4096]{0}', space=vmem, size = 0x1000, scoped, tag = 'scoped mem for output reshape']
    #allocation1 [shape = 'u8[4096]{0}', space=vmem, size = 0x1000, scoped, tag = 'scoped mem for input reshape']
    %s3 = sshllo.u32 0, 4
    %v4 = vld [vmem:[%s0] sm:%s3]
    %5 = vst [vmem:[#allocation1] sm:%s3] %v4
    %v6 = vld [vmem:[#allocation1] sm:$0x1]
    %vm7 = vcmask 261120
    %8 = vst.msk [vmem:[#allocation0] sm:$0x1] %vm7, %v6
    %s9 = scalar_lea.vmem [#allocation1], 3
    %v10 = vld [vmem:[%s9] sm:$0x1]
    %11 = vrot.lane.b32.xlu0 %v10, 96
    %v12 = vpop.permute.xlu0 %11
    %vm13 = vcmask 1048320
    %14 = vst.msk [vmem:[#allocation0] sm:$0x1] %vm13, %v12
    %s15 = scalar_lea.vmem [#allocation1], 2
    %v16 = vld [vmem:[%s15] sm:$0x1]
    %17 = vrot.lane.b32.xlu0 %v16, 64
    %v18 = vpop.permute.xlu0 %17
    %vm19 = vcmask 785920
    %20 = vst.msk [vmem:[#allocation0] sm:$0x1] %vm19, %v18
    %s21 = scalar_lea.vmem [#allocation1], 1
    %v22 = vld [vmem:[%s21] sm:$0x1]
    %23 = vrot.lane.b32.xlu0 %v22, 32
    %v24 = vpop.permute.xlu0 %23
    %vm25 = vcmask 523520
    %26 = vst.msk [vmem:[#allocation0] sm:$0x1] %vm25, %v24
    %s28 = sshllo.u32 0, 1
    %v30 = vld [vmem:[#allocation0] sm:%s28]
    %s31 = sshllo.u32 0, 1
    %32 = vst [vmem:[%s1] sm:%s31] %v30

// kernel: up_forward.1
$region0: #{up_forward.1}
  #allocation0 [shape = 'u32[]', space=smem, size = 0x4, offset = 0x4, fixed_abs, tag = 'smem constant byte address 0x4 - core index']
  #allocation1 [shape = 'u32[144,128]{1,0:T(1,128)}', space=vmem, size = 0x12000, scoped, tag = 'internal scratch']
  %s0 = inlined_call_operand.vmem [shape: f32[384,64], index: 0, kind: input, shape index: {}]
  %s1 = inlined_call_operand.vmem [shape: f32[64,128], index: 1, kind: input, shape index: {}]
  %s2 = inlined_call_operand.vmem [shape: f32[1,128], index: 2, kind: input, shape index: {}]
  %s3 = inlined_call_operand.vmem [shape: f32[384,128], index: 3, kind: input, shape index: {}]
  %s4 = inlined_call_operand.vmem [shape: f32[384,128], index: 4, kind: output, shape index: {}]
  %s5 = sld [smem:[#allocation0]]
  $region26: #{up_forward.1} parent=0
    _
  %s7 = ssub.s32 1, %s5
  %s8 = scalar_select 0, %s7, %s5
  // Predicated region
  $region2: #{up_forward.1} parent=0 // pred_check
    _
  $region3: #{up_forward.1} parent=0 // pred_check_branch
    %10 = sbr.rel (0) target = $region5
  $region4: #{up_forward.1} parent=0 // pred_region
    _
  $region5: #{up_forward.1} parent=0 // pred_fallthru
    _
  // Predicated region
  $region6: #{up_forward.1} parent=0 // pred_check
    _
  $region7: #{up_forward.1} parent=0 // pred_check_branch
    %12 = sbr.rel (0) target = $region9
  $region8: #{up_forward.1} parent=0 // pred_region
    _
  $region9: #{up_forward.1} parent=0 // pred_fallthru
    _
  // Predicated region
  $region10: #{up_forward.1} parent=0 // pred_check
    _
  $region11: #{up_forward.1} parent=0 // pred_check_branch
    %14 = sbr.rel (0) target = $region13
  $region12: #{up_forward.1} parent=0 // pred_region
    _
  $region13: #{up_forward.1} parent=0 // pred_fallthru
    _
  // Predicated region
  $region14: #{up_forward.1} parent=0 // pred_check
    _
  $region15: #{up_forward.1} parent=0 // pred_check_branch
    %16 = sbr.rel (0) target = $region17
  $region16: #{up_forward.1} parent=0 // pred_region
    _
  $region17: #{up_forward.1} parent=0 // pred_fallthru
    _
  %v17 = vld [vmem:[%s0] sm:$0xff]
  %v18 = vld [vmem:[%s0 + $0x8] sm:$0xff]
  %v19 = vld [vmem:[%s0 + $0x10] sm:$0xff]
  %v20 = vld [vmem:[%s0 + $0x18] sm:$0xff]
  %v21 = vld [vmem:[%s0 + $0x20] sm:$0xff]
  %v22 = vld [vmem:[%s0 + $0x28] sm:$0xff]
  %v23 = vld [vmem:[%s0 + $0x30] sm:$0xff]
  %v24 = vld [vmem:[%s0 + $0x38] sm:$0xff]
  %v25 = vld [vmem:[%s0 + $0x40] sm:$0xff]
  %v26 = vld [vmem:[%s0 + $0x48] sm:$0xff]
  %v27 = vld [vmem:[%s0 + $0x50] sm:$0xff]
  %v28 = vld [vmem:[%s0 + $0x58] sm:$0xff]
  %v29 = vld [vmem:[%s0 + $0x60] sm:$0xff]
  %v30 = vld [vmem:[%s0 + $0x68] sm:$0xff]
  %v31 = vld [vmem:[%s0 + $0x70] sm:$0xff]
  %v32 = vld [vmem:[%s0 + $0x78] sm:$0xff]
  %v33 = vld [vmem:[%s0 + $0x80] sm:$0xff]
  %v34 = vld [vmem:[%s0 + $0x88] sm:$0xff]
  %v35 = vld [vmem:[%s0 + $0x90] sm:$0xff]
  %v36 = vld [vmem:[%s0 + $0x98] sm:$0xff]
  %v37 = vld [vmem:[%s0 + $0xa0] sm:$0xff]
  %v38 = vld [vmem:[%s0 + $0xa8] sm:$0xff]
  %v39 = vld [vmem:[%s0 + $0xb0] sm:$0xff]
  %v40 = vld [vmem:[%s0 + $0xb8] sm:$0xff]
  %v41 = vld [vmem:[%s0 + $0xc0] sm:$0xff]
  %v42 = vld [vmem:[%s0 + $0xc8] sm:$0xff]
  %v43 = vld [vmem:[%s0 + $0xd0] sm:$0xff]
  %v44 = vld [vmem:[%s0 + $0xd8] sm:$0xff]
  %v45 = vld [vmem:[%s0 + $0xe0] sm:$0xff]
  %v46 = vld [vmem:[%s0 + $0xe8] sm:$0xff]
  %v47 = vld [vmem:[%s0 + $0xf0] sm:$0xff]
  %v48 = vld [vmem:[%s0 + $0xf8] sm:$0xff]
  %v49 = vld [vmem:[%s0 + $0x100] sm:$0xff]
  %v50 = vld [vmem:[%s0 + $0x108] sm:$0xff]
  %v51 = vld [vmem:[%s0 + $0x110] sm:$0xff]
  %v52 = vld [vmem:[%s0 + $0x118] sm:$0xff]
  %v53 = vld [vmem:[%s0 + $0x120] sm:$0xff]
  %v54 = vld [vmem:[%s0 + $0x128] sm:$0xff]
  %v55 = vld [vmem:[%s0 + $0x130] sm:$0xff]
  %v56 = vld [vmem:[%s0 + $0x138] sm:$0xff]
  %v57 = vld [vmem:[%s0 + $0x140] sm:$0xff]
  %v58 = vld [vmem:[%s0 + $0x148] sm:$0xff]
  %v59 = vld [vmem:[%s0 + $0x150] sm:$0xff]
  %v60 = vld [vmem:[%s0 + $0x158] sm:$0xff]
  %v61 = vld [vmem:[%s0 + $0x160] sm:$0xff]
  %v62 = vld [vmem:[%s0 + $0x168] sm:$0xff]
  %v63 = vld [vmem:[%s0 + $0x170] sm:$0xff]
  %v64 = vld [vmem:[%s0 + $0x178] sm:$0xff]
  %v65 = vld [vmem:[%s1] sm:$0xff]
  %v66 = vld [vmem:[%s1 + $0x8] sm:$0xff]
  %v67 = vld [vmem:[%s1 + $0x10] sm:$0xff]
  %v68 = vld [vmem:[%s1 + $0x18] sm:$0xff]
  %v69 = vld [vmem:[%s1 + $0x20] sm:$0xff]
  %v70 = vld [vmem:[%s1 + $0x28] sm:$0xff]
  %v71 = vld [vmem:[%s1 + $0x30] sm:$0xff]
  %v72 = vld [vmem:[%s1 + $0x38] sm:$0xff]
  %vm73 = vcmask 523264
  %v75 = vsel %vm73, %v17, 0
  %v78 = vsel %vm73, %v18, 0
  %v81 = vsel %vm73, %v19, 0
  %v84 = vsel %vm73, %v20, 0
  %v87 = vsel %vm73, %v21, 0
  %v90 = vsel %vm73, %v22, 0
  %v93 = vsel %vm73, %v23, 0
  %v96 = vsel %vm73, %v24, 0
  %v99 = vsel %vm73, %v25, 0
  %v102 = vsel %vm73, %v26, 0
  %v105 = vsel %vm73, %v27, 0
  %v108 = vsel %vm73, %v28, 0
  %v111 = vsel %vm73, %v29, 0
  %v114 = vsel %vm73, %v30, 0
  %v117 = vsel %vm73, %v31, 0
  %v120 = vsel %vm73, %v32, 0
  %v123 = vsel %vm73, %v33, 0
  %v126 = vsel %vm73, %v34, 0
  %v129 = vsel %vm73, %v35, 0
  %v132 = vsel %vm73, %v36, 0
  %v135 = vsel %vm73, %v37, 0
  %v138 = vsel %vm73, %v38, 0
  %v141 = vsel %vm73, %v39, 0
  %v144 = vsel %vm73, %v40, 0
  %v147 = vsel %vm73, %v41, 0
  %v150 = vsel %vm73, %v42, 0
  %v153 = vsel %vm73, %v43, 0
  %v156 = vsel %vm73, %v44, 0
  %v159 = vsel %vm73, %v45, 0
  %v162 = vsel %vm73, %v46, 0
  %v165 = vsel %vm73, %v47, 0
  %v168 = vsel %vm73, %v48, 0
  %v171 = vsel %vm73, %v49, 0
  %v174 = vsel %vm73, %v50, 0
  %v177 = vsel %vm73, %v51, 0
  %v180 = vsel %vm73, %v52, 0
  %v183 = vsel %vm73, %v53, 0
  %v186 = vsel %vm73, %v54, 0
  %v189 = vsel %vm73, %v55, 0
  %v192 = vsel %vm73, %v56, 0
  %v195 = vsel %vm73, %v57, 0
  %v198 = vsel %vm73, %v58, 0
  %v201 = vsel %vm73, %v59, 0
  %v204 = vsel %vm73, %v60, 0
  %v207 = vsel %vm73, %v61, 0
  %v210 = vsel %vm73, %v62, 0
  %v213 = vsel %vm73, %v63, 0
  %v216 = vsel %vm73, %v64, 0
  %218 = vmatprep.subr.mxu0 0.0
  %219 = vmatpush1.msra.mxu0 %v65
  %220 = vmatprep.subr.mxu0 0.0
  %221 = vmatpush1.msra.mxu0 %v66
  %222 = vmatprep.subr.mxu0 0.0
  %223 = vmatpush1.msra.mxu0 %v67
  %224 = vmatprep.subr.mxu0 0.0
  %225 = vmatpush1.msra.mxu0 %v68
  %226 = vmatprep.subr.mxu0 0.0
  %227 = vmatpush1.msra.mxu0 %v69
  %228 = vmatprep.subr.mxu0 0.0
  %229 = vmatpush1.msra.mxu0 %v70
  %230 = vmatprep.subr.mxu0 0.0
  %231 = vmatpush1.msra.mxu0 %v71
  %232 = vmatprep.subr.mxu0 0.0
  %233 = vmatpush1.msra.mxu0 %v72
  %234 = vmatprep.subr.mxu0 0.0
  %235 = vmatpush1.msra.mxu0 0.0
  %236 = vmatprep.subr.mxu0 0.0
  %237 = vmatpush1.msra.mxu0 0.0
  %238 = vmatprep.subr.mxu0 0.0
  %239 = vmatpush1.msra.mxu0 0.0
  %240 = vmatprep.subr.mxu0 0.0
  %241 = vmatpush1.msra.mxu0 0.0
  %242 = vmatprep.subr.mxu0 0.0
  %243 = vmatpush1.msra.mxu0 0.0
  %244 = vmatprep.subr.mxu0 0.0
  %245 = vmatpush1.msra.mxu0 0.0
  %246 = vmatprep.subr.mxu0 0.0
  %247 = vmatpush1.msra.mxu0 0.0
  %248 = vmatprep.subr.mxu0 0.0
  %249 = vmatpush1.msra.mxu0 0.0
  %250 = vmatprep.subr.mxu0 0.0
  %251 = vmatpush1.msra.mxu0 0.0
  %252 = vmatprep.subr.mxu0 0.0
  %253 = vmatpush1.msra.mxu0 0.0
  %254 = vmatprep.subr.mxu0 0.0
  %255 = vmatpush1.msra.mxu0 0.0
  %256 = vmatprep.subr.mxu0 0.0
  %257 = vmatpush1.msra.mxu0 0.0
  %258 = vmatprep.subr.mxu0 0.0
  %259 = vmatpush1.msra.mxu0 0.0
  %260 = vmatprep.subr.mxu0 0.0
  %261 = vmatpush1.msra.mxu0 0.0
  %262 = vmatprep.subr.mxu0 0.0
  %263 = vmatpush1.msra.mxu0 0.0
  %264 = vmatprep.subr.mxu0 0.0
  %265 = vmatpush1.msra.mxu0 0.0
  %266 = vmatprep.subr.mxu0 0.0
  %267 = vmatpush1.msra.mxu0 0.0
  %268 = vmatprep.subr.mxu0 0.0
  %269 = vmatpush1.msra.mxu0 0.0
  %270 = vmatprep.subr.mxu0 0.0
  %271 = vmatpush1.msra.mxu0 0.0
  %272 = vmatprep.subr.mxu0 0.0
  %273 = vmatpush1.msra.mxu0 0.0
  %274 = vmatprep.subr.mxu0 0.0
  %275 = vmatpush1.msra.mxu0 0.0
  %276 = vmatprep.subr.mxu0 0.0
  %277 = vmatpush1.msra.mxu0 0.0
  %278 = vmatprep.subr.mxu0 0.0
  %279 = vmatpush1.msra.mxu0 0.0
  %280 = vmatprep.subr.mxu0 0.0
  %281 = vmatpush1.msra.mxu0 0.0
  %282 = vmatprep.mubr.f32.mxu0 0.0
  %283 = vmatmul.mubr.f32.gmra.mrb[0].mxu0 %v75
  %v284 = vpop.f32.mrb[0].mxu0
  %v285 = vadd.f32 0.0, %v284
  %v286 = vpop.f32.mrb[0].mxu0
  %287 = vmatprep.mubr.f32.mxu0 0.0
  %288 = vmatmul.mubr.f32.gmra.mrb[0].mxu0 %v78
  %v289 = vpop.f32.mrb[0].mxu0
  %v290 = vadd.f32 0.0, %v289
  %v291 = vpop.f32.mrb[0].mxu0
  %292 = vmatprep.mubr.f32.mxu0 0.0
  %293 = vmatmul.mubr.f32.gmra.mrb[0].mxu0 %v81
  %v294 = vpop.f32.mrb[0].mxu0
  %v295 = vadd.f32 0.0, %v294
  %v296 = vpop.f32.mrb[0].mxu0
  %297 = vmatprep.mubr.f32.mxu0 0.0
  %298 = vmatmul.mubr.f32.gmra.mrb[0].mxu0 %v84
  %v299 = vpop.f32.mrb[0].mxu0
  %v300 = vadd.f32 0.0, %v299
  %v301 = vpop.f32.mrb[0].mxu0
  %302 = vmatprep.mubr.f32.mxu0 0.0
  %303 = vmatmul.mubr.f32.gmra.mrb[0].mxu0 %v87
  %v304 = vpop.f32.mrb[0].mxu0
  %v305 = vadd.f32 0.0, %v304
  %v306 = vpop.f32.mrb[0].mxu0
  %307 = vmatprep.mubr.f32.mxu0 0.0
  %308 = vmatmul.mubr.f32.gmra.mrb[0].mxu0 %v90
  %v309 = vpop.f32.mrb[0].mxu0
  %v310 = vadd.f32 0.0, %v309
  %v311 = vpop.f32.mrb[0].mxu0
  %312 = vmatprep.mubr.f32.mxu0 0.0
  %313 = vmatmul.mubr.f32.gmra.mrb[0].mxu0 %v93
  %v314 = vpop.f32.mrb[0].mxu0
  %v315 = vadd.f32 0.0, %v314
  %v316 = vpop.f32.mrb[0].mxu0
  %317 = vmatprep.mubr.f32.mxu0 0.0
  %318 = vmatmul.mubr.f32.gmra.mrb[0].mxu0 %v96
  %v319 = vpop.f32.mrb[0].mxu0
  %v320 = vadd.f32 0.0, %v319
  %v321 = vpop.f32.mrb[0].mxu0
  %322 = vmatprep.mubr.f32.mxu0 0.0
  %323 = vmatmul.mubr.f32.gmra.mrb[0].mxu0 %v99
  %v324 = vpop.f32.mrb[0].mxu0
  %v325 = vadd.f32 0.0, %v324
  %v326 = vpop.f32.mrb[0].mxu0
  %327 = vmatprep.mubr.f32.mxu0 0.0
  %328 = vmatmul.mubr.f32.gmra.mrb[0].mxu0 %v102
  %v329 = vpop.f32.mrb[0].mxu0
  %v330 = vadd.f32 0.0, %v329
  %v331 = vpop.f32.mrb[0].mxu0
  %332 = vmatprep.mubr.f32.mxu0 0.0
  %333 = vmatmul.mubr.f32.gmra.mrb[0].mxu0 %v105
  %v334 = vpop.f32.mrb[0].mxu0
  %v335 = vadd.f32 0.0, %v334
  %v336 = vpop.f32.mrb[0].mxu0
  %337 = vmatprep.mubr.f32.mxu0 0.0
  %338 = vmatmul.mubr.f32.gmra.mrb[0].mxu0 %v108
  %v339 = vpop.f32.mrb[0].mxu0
  %v340 = vadd.f32 0.0, %v339
  %v341 = vpop.f32.mrb[0].mxu0
  %342 = vmatprep.mubr.f32.mxu0 0.0
  %343 = vmatmul.mubr.f32.gmra.mrb[0].mxu0 %v111
  %v344 = vpop.f32.mrb[0].mxu0
  %v345 = vadd.f32 0.0, %v344
  %v346 = vpop.f32.mrb[0].mxu0
  %347 = vmatprep.mubr.f32.mxu0 0.0
  %348 = vmatmul.mubr.f32.gmra.mrb[0].mxu0 %v114
  %v349 = vpop.f32.mrb[0].mxu0
  %v350 = vadd.f32 0.0, %v349
  %v351 = vpop.f32.mrb[0].mxu0
  %352 = vmatprep.mubr.f32.mxu0 0.0
  %353 = vmatmul.mubr.f32.gmra.mrb[0].mxu0 %v117
  %v354 = vpop.f32.mrb[0].mxu0
  %v355 = vadd.f32 0.0, %v354
  %v356 = vpop.f32.mrb[0].mxu0
  %357 = vmatprep.mubr.f32.mxu0 0.0
  %358 = vmatmul.mubr.f32.gmra.mrb[0].mxu0 %v120
  %v359 = vpop.f32.mrb[0].mxu0
  %v360 = vadd.f32 0.0, %v359
  %v361 = vpop.f32.mrb[0].mxu0
  %362 = vmatprep.mubr.f32.mxu0 0.0
  %363 = vmatmul.mubr.f32.gmra.mrb[0].mxu0 %v123
  %v364 = vpop.f32.mrb[0].mxu0
  %v365 = vadd.f32 0.0, %v364
  %v366 = vpop.f32.mrb[0].mxu0
  %367 = vmatprep.mubr.f32.mxu0 0.0
  %368 = vmatmul.mubr.f32.gmra.mrb[0].mxu0 %v126
  %v369 = vpop.f32.mrb[0].mxu0
  %v370 = vadd.f32 0.0, %v369
  %v371 = vpop.f32.mrb[0].mxu0
  %372 = vmatprep.mubr.f32.mxu0 0.0
  %373 = vmatmul.mubr.f32.gmra.mrb[0].mxu0 %v129
  %v374 = vpop.f32.mrb[0].mxu0
  %v375 = vadd.f32 0.0, %v374
  %v376 = vpop.f32.mrb[0].mxu0
  %377 = vmatprep.mubr.f32.mxu0 0.0
  %378 = vmatmul.mubr.f32.gmra.mrb[0].mxu0 %v132
  %v379 = vpop.f32.mrb[0].mxu0
  %v380 = vadd.f32 0.0, %v379
  %v381 = vpop.f32.mrb[0].mxu0
  %382 = vmatprep.mubr.f32.mxu0 0.0
  %383 = vmatmul.mubr.f32.gmra.mrb[0].mxu0 %v135
  %v384 = vpop.f32.mrb[0].mxu0
  %v385 = vadd.f32 0.0, %v384
  %v386 = vpop.f32.mrb[0].mxu0
  %387 = vmatprep.mubr.f32.mxu0 0.0
  %388 = vmatmul.mubr.f32.gmra.mrb[0].mxu0 %v138
  %v389 = vpop.f32.mrb[0].mxu0
  %v390 = vadd.f32 0.0, %v389
  %v391 = vpop.f32.mrb[0].mxu0
  %392 = vmatprep.mubr.f32.mxu0 0.0
  %393 = vmatmul.mubr.f32.gmra.mrb[0].mxu0 %v141
  %v394 = vpop.f32.mrb[0].mxu0
  %v395 = vadd.f32 0.0, %v394
  %v396 = vpop.f32.mrb[0].mxu0
  %397 = vmatprep.mubr.f32.mxu0 0.0
  %398 = vmatmul.mubr.f32.gmra.mrb[0].mxu0 %v144
  %v399 = vpop.f32.mrb[0].mxu0
  %v400 = vadd.f32 0.0, %v399
  %v401 = vpop.f32.mrb[0].mxu0
  %402 = vmatprep.mubr.f32.mxu0 0.0
  %403 = vmatmul.mubr.f32.gmra.mrb[0].mxu0 %v147
  %v404 = vpop.f32.mrb[0].mxu0
  %v405 = vadd.f32 0.0, %v404
  %v406 = vpop.f32.mrb[0].mxu0
  %407 = vmatprep.mubr.f32.mxu0 0.0
  %408 = vmatmul.mubr.f32.gmra.mrb[0].mxu0 %v150
  %v409 = vpop.f32.mrb[0].mxu0
  %v410 = vadd.f32 0.0, %v409
  %v411 = vpop.f32.mrb[0].mxu0
  %412 = vmatprep.mubr.f32.mxu0 0.0
  %413 = vmatmul.mubr.f32.gmra.mrb[0].mxu0 %v153
  %v414 = vpop.f32.mrb[0].mxu0
  %v415 = vadd.f32 0.0, %v414
  %v416 = vpop.f32.mrb[0].mxu0
  %417 = vmatprep.mubr.f32.mxu0 0.0
  %418 = vmatmul.mubr.f32.gmra.mrb[0].mxu0 %v156
  %v419 = vpop.f32.mrb[0].mxu0
  %v420 = vadd.f32 0.0, %v419
  %v421 = vpop.f32.mrb[0].mxu0
  %422 = vmatprep.mubr.f32.mxu0 0.0
  %423 = vmatmul.mubr.f32.gmra.mrb[0].mxu0 %v159
  %v424 = vpop.f32.mrb[0].mxu0
  %v425 = vadd.f32 0.0, %v424
  %v426 = vpop.f32.mrb[0].mxu0
  %427 = vmatprep.mubr.f32.mxu0 0.0
  %428 = vmatmul.mubr.f32.gmra.mrb[0].mxu0 %v162
  %v429 = vpop.f32.mrb[0].mxu0
  %v430 = vadd.f32 0.0, %v429
  %v431 = vpop.f32.mrb[0].mxu0
  %432 = vmatprep.mubr.f32.mxu0 0.0
  %433 = vmatmul.mubr.f32.gmra.mrb[0].mxu0 %v165
  %v434 = vpop.f32.mrb[0].mxu0
  %v435 = vadd.f32 0.0, %v434
  %v436 = vpop.f32.mrb[0].mxu0
  %437 = vmatprep.mubr.f32.mxu0 0.0
  %438 = vmatmul.mubr.f32.gmra.mrb[0].mxu0 %v168
  %v439 = vpop.f32.mrb[0].mxu0
  %v440 = vadd.f32 0.0, %v439
  %v441 = vpop.f32.mrb[0].mxu0
  %442 = vmatprep.mubr.f32.mxu0 0.0
  %443 = vmatmul.mubr.f32.gmra.mrb[0].mxu0 %v171
  %v444 = vpop.f32.mrb[0].mxu0
  %v445 = vadd.f32 0.0, %v444
  %v446 = vpop.f32.mrb[0].mxu0
  %447 = vmatprep.mubr.f32.mxu0 0.0
  %448 = vmatmul.mubr.f32.gmra.mrb[0].mxu0 %v174
  %v449 = vpop.f32.mrb[0].mxu0
  %v450 = vadd.f32 0.0, %v449
  %v451 = vpop.f32.mrb[0].mxu0
  %452 = vmatprep.mubr.f32.mxu0 0.0
  %453 = vmatmul.mubr.f32.gmra.mrb[0].mxu0 %v177
  %v454 = vpop.f32.mrb[0].mxu0
  %v455 = vadd.f32 0.0, %v454
  %v456 = vpop.f32.mrb[0].mxu0
  %457 = vmatprep.mubr.f32.mxu0 0.0
  %458 = vmatmul.mubr.f32.gmra.mrb[0].mxu0 %v180
  %v459 = vpop.f32.mrb[0].mxu0
  %v460 = vadd.f32 0.0, %v459
  %v461 = vpop.f32.mrb[0].mxu0
  %462 = vmatprep.mubr.f32.mxu0 0.0
  %463 = vmatmul.mubr.f32.gmra.mrb[0].mxu0 %v183
  %v464 = vpop.f32.mrb[0].mxu0
  %v465 = vadd.f32 0.0, %v464
  %v466 = vpop.f32.mrb[0].mxu0
  %467 = vmatprep.mubr.f32.mxu0 0.0
  %468 = vmatmul.mubr.f32.gmra.mrb[0].mxu0 %v186
  %v469 = vpop.f32.mrb[0].mxu0
  %v470 = vadd.f32 0.0, %v469
  %v471 = vpop.f32.mrb[0].mxu0
  %472 = vmatprep.mubr.f32.mxu0 0.0
  %473 = vmatmul.mubr.f32.gmra.mrb[0].mxu0 %v189
  %v474 = vpop.f32.mrb[0].mxu0
  %v475 = vadd.f32 0.0, %v474
  %v476 = vpop.f32.mrb[0].mxu0
  %477 = vmatprep.mubr.f32.mxu0 0.0
  %478 = vmatmul.mubr.f32.gmra.mrb[0].mxu0 %v192
  %v479 = vpop.f32.mrb[0].mxu0
  %v480 = vadd.f32 0.0, %v479
  %v481 = vpop.f32.mrb[0].mxu0
  %482 = vmatprep.mubr.f32.mxu0 0.0
  %483 = vmatmul.mubr.f32.gmra.mrb[0].mxu0 %v195
  %v484 = vpop.f32.mrb[0].mxu0
  %v485 = vadd.f32 0.0, %v484
  %v486 = vpop.f32.mrb[0].mxu0
  %487 = vmatprep.mubr.f32.mxu0 0.0
  %488 = vmatmul.mubr.f32.gmra.mrb[0].mxu0 %v198
  %v489 = vpop.f32.mrb[0].mxu0
  %v490 = vadd.f32 0.0, %v489
  %v491 = vpop.f32.mrb[0].mxu0
  %492 = vmatprep.mubr.f32.mxu0 0.0
  %493 = vmatmul.mubr.f32.gmra.mrb[0].mxu0 %v201
  %v494 = vpop.f32.mrb[0].mxu0
  %v495 = vadd.f32 0.0, %v494
  %v496 = vpop.f32.mrb[0].mxu0
  %497 = vmatprep.mubr.f32.mxu0 0.0
  %498 = vmatmul.mubr.f32.gmra.mrb[0].mxu0 %v204
  %v499 = vpop.f32.mrb[0].mxu0
  %v500 = vadd.f32 0.0, %v499
  %v501 = vpop.f32.mrb[0].mxu0
  %502 = vmatprep.mubr.f32.mxu0 0.0
  %503 = vmatmul.mubr.f32.gmra.mrb[0].mxu0 %v207
  %v504 = vpop.f32.mrb[0].mxu0
  %v505 = vadd.f32 0.0, %v504
  %v506 = vpop.f32.mrb[0].mxu0
  %507 = vmatprep.mubr.f32.mxu0 0.0
  %508 = vmatmul.mubr.f32.gmra.mrb[0].mxu0 %v210
  %v509 = vpop.f32.mrb[0].mxu0
  %v510 = vadd.f32 0.0, %v509
  %v511 = vpop.f32.mrb[0].mxu0
  %512 = vmatprep.mubr.f32.mxu0 0.0
  %513 = vmatmul.mubr.f32.gmra.mrb[0].mxu0 %v213
  %v514 = vpop.f32.mrb[0].mxu0
  %v515 = vadd.f32 0.0, %v514
  %v516 = vpop.f32.mrb[0].mxu0
  %517 = vmatprep.mubr.f32.mxu0 0.0
  %518 = vmatmul.mubr.f32.gmra.mrb[0].mxu0 %v216
  %v519 = vpop.f32.mrb[0].mxu0
  %v520 = vadd.f32 0.0, %v519
  %v521 = vpop.f32.mrb[0].mxu0
  %522 = vdwg.mxu0
  %v523 = vld [vmem:[%s3] sm:$0xff]
  %v524 = vld [vmem:[%s3 + $0x8] sm:$0xff]
  %v525 = vld [vmem:[%s3 + $0x10] sm:$0xff]
  %v526 = vld [vmem:[%s3 + $0x18] sm:$0xff]
  %v527 = vld [vmem:[%s3 + $0x20] sm:$0xff]
  %v528 = vld [vmem:[%s3 + $0x28] sm:$0xff]
  %v529 = vld [vmem:[%s3 + $0x30] sm:$0xff]
  %v530 = vld [vmem:[%s3 + $0x38] sm:$0xff]
  %v531 = vld [vmem:[%s3 + $0x40] sm:$0xff]
  %v532 = vld [vmem:[%s3 + $0x48] sm:$0xff]
  %v533 = vld [vmem:[%s3 + $0x50] sm:$0xff]
  %v534 = vld [vmem:[%s3 + $0x58] sm:$0xff]
  %v535 = vld [vmem:[%s3 + $0x60] sm:$0xff]
  %v536 = vld [vmem:[%s3 + $0x68] sm:$0xff]
  %v537 = vld [vmem:[%s3 + $0x70] sm:$0xff]
  %v538 = vld [vmem:[%s3 + $0x78] sm:$0xff]
  %v539 = vld [vmem:[%s3 + $0x80] sm:$0xff]
  %v540 = vld [vmem:[%s3 + $0x88] sm:$0xff]
  %v541 = vld [vmem:[%s3 + $0x90] sm:$0xff]
  %v542 = vld [vmem:[%s3 + $0x98] sm:$0xff]
  %v543 = vld [vmem:[%s3 + $0xa0] sm:$0xff]
  %v544 = vld [vmem:[%s3 + $0xa8] sm:$0xff]
  %v545 = vld [vmem:[%s3 + $0xb0] sm:$0xff]
  %v546 = vld [vmem:[%s3 + $0xb8] sm:$0xff]
  %v547 = vld [vmem:[%s3 + $0xc0] sm:$0xff]
  %v548 = vld [vmem:[%s3 + $0xc8] sm:$0xff]
  %v549 = vld [vmem:[%s3 + $0xd0] sm:$0xff]
  %v550 = vld [vmem:[%s3 + $0xd8] sm:$0xff]
  %v551 = vld [vmem:[%s3 + $0xe0] sm:$0xff]
  %v552 = vld [vmem:[%s3 + $0xe8] sm:$0xff]
  %v553 = vld [vmem:[%s3 + $0xf0] sm:$0xff]
  %v554 = vld [vmem:[%s3 + $0xf8] sm:$0xff]
  %v555 = vld [vmem:[%s3 + $0x100] sm:$0xff]
  %v556 = vld [vmem:[%s3 + $0x108] sm:$0xff]
  %v557 = vld [vmem:[%s3 + $0x110] sm:$0xff]
  %v558 = vld [vmem:[%s3 + $0x118] sm:$0xff]
  %v559 = vld [vmem:[%s3 + $0x120] sm:$0xff]
  %v560 = vld [vmem:[%s3 + $0x128] sm:$0xff]
  %v561 = vld [vmem:[%s3 + $0x130] sm:$0xff]
  %v562 = vld [vmem:[%s3 + $0x138] sm:$0xff]
  %v563 = vld [vmem:[%s3 + $0x140] sm:$0xff]
  %v564 = vld [vmem:[%s3 + $0x148] sm:$0xff]
  %v565 = vld [vmem:[%s3 + $0x150] sm:$0xff]
  %v566 = vld [vmem:[%s3 + $0x158] sm:$0xff]
  %v567 = vld [vmem:[%s3 + $0x160] sm:$0xff]
  %v568 = vld [vmem:[%s3 + $0x168] sm:$0xff]
  %v569 = vld [vmem:[%s3 + $0x170] sm:$0xff]
  %v570 = vld [vmem:[%s3 + $0x178] sm:$0xff]
  %v571 = vadd.f32 %v523, %v285
  %v572 = vadd.f32 %v524, %v290
  %v573 = vadd.f32 %v525, %v295
  %v574 = vadd.f32 %v526, %v300
  %v575 = vadd.f32 %v527, %v305
  %v576 = vadd.f32 %v528, %v310
  %v577 = vadd.f32 %v529, %v315
  %v578 = vadd.f32 %v530, %v320
  %v579 = vadd.f32 %v531, %v325
  %v580 = vadd.f32 %v532, %v330
  %v581 = vadd.f32 %v533, %v335
  %v582 = vadd.f32 %v534, %v340
  %v583 = vadd.f32 %v535, %v345
  %v584 = vadd.f32 %v536, %v350
  %v585 = vadd.f32 %v537, %v355
  %v586 = vadd.f32 %v538, %v360
  %v587 = vadd.f32 %v539, %v365
  %v588 = vadd.f32 %v540, %v370
  %v589 = vadd.f32 %v541, %v375
  %v590 = vadd.f32 %v542, %v380
  %v591 = vadd.f32 %v543, %v385
  %v592 = vadd.f32 %v544, %v390
  %v593 = vadd.f32 %v545, %v395
  %v594 = vadd.f32 %v546, %v400
  %v595 = vadd.f32 %v547, %v405
  %v596 = vadd.f32 %v548, %v410
  %v597 = vadd.f32 %v549, %v415
  %v598 = vadd.f32 %v550, %v420
  %v599 = vadd.f32 %v551, %v425
  %v600 = vadd.f32 %v552, %v430
  %v601 = vadd.f32 %v553, %v435
  %v602 = vadd.f32 %v554, %v440
  %v603 = vadd.f32 %v555, %v445
  %v604 = vadd.f32 %v556, %v450
  %v605 = vadd.f32 %v557, %v455
  %v606 = vadd.f32 %v558, %v460
  %v607 = vadd.f32 %v559, %v465
  %v608 = vadd.f32 %v560, %v470
  %v609 = vadd.f32 %v561, %v475
  %v610 = vadd.f32 %v562, %v480
  %v611 = vadd.f32 %v563, %v485
  %v612 = vadd.f32 %v564, %v490
  %v613 = vadd.f32 %v565, %v495
  %v614 = vadd.f32 %v566, %v500
  %v615 = vadd.f32 %v567, %v505
  %v616 = vadd.f32 %v568, %v510
  %v617 = vadd.f32 %v569, %v515
  %v618 = vadd.f32 %v570, %v520
  %v619 = vld [vmem:[%s2] sm:$0x1]
  %v621 = vlaneseq
  %v622 = vshrl.u32 %v621, 7
  %v623 = vsub.s32 0, %v622
  %v624 = vrot.slane %v619, %v623
  %v626 = vadd.f32 %v571, %v624
  %v627 = vadd.f32 %v572, %v624
  %v628 = vadd.f32 %v573, %v624
  %v629 = vadd.f32 %v574, %v624
  %v630 = vadd.f32 %v575, %v624
  %v631 = vadd.f32 %v576, %v624
  %v632 = vadd.f32 %v577, %v624
  %v633 = vadd.f32 %v578, %v624
  %v634 = vadd.f32 %v579, %v624
  %v635 = vadd.f32 %v580, %v624
  %v636 = vadd.f32 %v581, %v624
  %v637 = vadd.f32 %v582, %v624
  %v638 = vadd.f32 %v583, %v624
  %v639 = vadd.f32 %v584, %v624
  %v640 = vadd.f32 %v585, %v624
  %v641 = vadd.f32 %v586, %v624
  %v642 = vadd.f32 %v587, %v624
  %v643 = vadd.f32 %v588, %v624
  %v644 = vadd.f32 %v589, %v624
  %v645 = vadd.f32 %v590, %v624
  %v646 = vadd.f32 %v591, %v624
  %v647 = vadd.f32 %v592, %v624
  %v648 = vadd.f32 %v593, %v624
  %v649 = vadd.f32 %v594, %v624
  %v650 = vadd.f32 %v595, %v624
  %v651 = vadd.f32 %v596, %v624
  %v652 = vadd.f32 %v597, %v624
  %v653 = vadd.f32 %v598, %v624
  %v654 = vadd.f32 %v599, %v624
  %v655 = vadd.f32 %v600, %v624
  %v656 = vadd.f32 %v601, %v624
  %v657 = vadd.f32 %v602, %v624
  %v658 = vadd.f32 %v603, %v624
  %v659 = vadd.f32 %v604, %v624
  %v660 = vadd.f32 %v605, %v624
  %v661 = vadd.f32 %v606, %v624
  %v662 = vadd.f32 %v607, %v624
  %v663 = vadd.f32 %v608, %v624
  %v664 = vadd.f32 %v609, %v624
  %v665 = vadd.f32 %v610, %v624
  %v666 = vadd.f32 %v611, %v624
  %v667 = vadd.f32 %v612, %v624
  %v668 = vadd.f32 %v613, %v624
  %v669 = vadd.f32 %v614, %v624
  %v670 = vadd.f32 %v615, %v624
  %v671 = vadd.f32 %v616, %v624
  %v672 = vadd.f32 %v617, %v624
  %v673 = vadd.f32 %v618, %v624
  %674 = vst [vmem:[%s4] sm:$0xff] %v626
  %675 = vst [vmem:[%s4 + $0x8] sm:$0xff] %v627
  %676 = vst [vmem:[%s4 + $0x10] sm:$0xff] %v628
  %677 = vst [vmem:[%s4 + $0x18] sm:$0xff] %v629
  %678 = vst [vmem:[%s4 + $0x20] sm:$0xff] %v630
  %679 = vst [vmem:[%s4 + $0x28] sm:$0xff] %v631
  %680 = vst [vmem:[%s4 + $0x30] sm:$0xff] %v632
  %681 = vst [vmem:[%s4 + $0x38] sm:$0xff] %v633
  %682 = vst [vmem:[%s4 + $0x40] sm:$0xff] %v634
  %683 = vst [vmem:[%s4 + $0x48] sm:$0xff] %v635
  %684 = vst [vmem:[%s4 + $0x50] sm:$0xff] %v636
  %685 = vst [vmem:[%s4 + $0x58] sm:$0xff] %v637
  %686 = vst [vmem:[%s4 + $0x60] sm:$0xff] %v638
  %687 = vst [vmem:[%s4 + $0x68] sm:$0xff] %v639
  %688 = vst [vmem:[%s4 + $0x70] sm:$0xff] %v640
  %689 = vst [vmem:[%s4 + $0x78] sm:$0xff] %v641
  %690 = vst [vmem:[%s4 + $0x80] sm:$0xff] %v642
  %691 = vst [vmem:[%s4 + $0x88] sm:$0xff] %v643
  %692 = vst [vmem:[%s4 + $0x90] sm:$0xff] %v644
  %693 = vst [vmem:[%s4 + $0x98] sm:$0xff] %v645
  %694 = vst [vmem:[%s4 + $0xa0] sm:$0xff] %v646
  %695 = vst [vmem:[%s4 + $0xa8] sm:$0xff] %v647
  %696 = vst [vmem:[%s4 + $0xb0] sm:$0xff] %v648
  %697 = vst [vmem:[%s4 + $0xb8] sm:$0xff] %v649
  %698 = vst [vmem:[%s4 + $0xc0] sm:$0xff] %v650
  %699 = vst [vmem:[%s4 + $0xc8] sm:$0xff] %v651
  %700 = vst [vmem:[%s4 + $0xd0] sm:$0xff] %v652
  %701 = vst [vmem:[%s4 + $0xd8] sm:$0xff] %v653
  %702 = vst [vmem:[%s4 + $0xe0] sm:$0xff] %v654
  %703 = vst [vmem:[%s4 + $0xe8] sm:$0xff] %v655
  %704 = vst [vmem:[%s4 + $0xf0] sm:$0xff] %v656
  %705 = vst [vmem:[%s4 + $0xf8] sm:$0xff] %v657
  %706 = vst [vmem:[%s4 + $0x100] sm:$0xff] %v658
  %707 = vst [vmem:[%s4 + $0x108] sm:$0xff] %v659
  %708 = vst [vmem:[%s4 + $0x110] sm:$0xff] %v660
  %709 = vst [vmem:[%s4 + $0x118] sm:$0xff] %v661
  %710 = vst [vmem:[%s4 + $0x120] sm:$0xff] %v662
  %711 = vst [vmem:[%s4 + $0x128] sm:$0xff] %v663
  %712 = vst [vmem:[%s4 + $0x130] sm:$0xff] %v664
  %713 = vst [vmem:[%s4 + $0x138] sm:$0xff] %v665
  %714 = vst [vmem:[%s4 + $0x140] sm:$0xff] %v666
  %715 = vst [vmem:[%s4 + $0x148] sm:$0xff] %v667
  %716 = vst [vmem:[%s4 + $0x150] sm:$0xff] %v668
  %717 = vst [vmem:[%s4 + $0x158] sm:$0xff] %v669
  %718 = vst [vmem:[%s4 + $0x160] sm:$0xff] %v670
  %719 = vst [vmem:[%s4 + $0x168] sm:$0xff] %v671
  %720 = vst [vmem:[%s4 + $0x170] sm:$0xff] %v672
  %721 = vst [vmem:[%s4 + $0x178] sm:$0xff] %v673
  // Predicated region
  $region18: #{up_forward.1} parent=0 // pred_check
    _
  $region19: #{up_forward.1} parent=0 // pred_check_branch
    %723 = sbr.rel (0) target = $region21
  $region20: #{up_forward.1} parent=0 // pred_region
    _
  $region21: #{up_forward.1} parent=0 // pred_fallthru
    _
  // Predicated region
  $region22: #{up_forward.1} parent=0 // pred_check
    _
  $region23: #{up_forward.1} parent=0 // pred_check_branch
    %725 = sbr.rel (0) target = $region25
  $region24: #{up_forward.1} parent=0 // pred_region
    _
  $region25: #{up_forward.1} parent=0 // pred_fallthru
    _

</llo_original>
